<compile_context>
chip_gen: v7x
topology: tpu7x:2x2x1
jax: 0.10.0
libtpu: 0.0.40
codegen_flags: <defaults>
</compile_context>

<pallas_src>
import functools

import jax
import jax.numpy as jnp
from jax.experimental import pallas as pl
from jax.experimental.pallas import tpu as pltpu

LANE = 128
SUBLANE = 8


def _sigmoid(x):
    # Explicit formula; saturates cleanly to 0/1 for |x| large (like torch.sigmoid).
    return 1.0 / (1.0 + jnp.exp(-x))


def _elem_loss(p, a, g):
    # Per-element contribution of both loss terms (each is later divided by n).
    diff = a - p
    fp = _sigmoid((p - 0.5) * 100.0) * _sigmoid((0.5 - a) * 100.0)
    return diff * diff + fp * (g * g)


def _loss_kernel(p_ref, a_ref, g_ref, o_ref, acc_ref, *,
                 tile_rows, tiles_per_split, m_rows, needs_mask):
    c = pl.program_id(0)          # parallel split (sharded across TCs when possible)
    i = pl.program_id(1)          # reduction axis

    @pl.when(i == 0)
    def _():
        acc_ref[...] = jnp.zeros_like(acc_ref)

    p = p_ref[...].astype(jnp.float32)
    a = a_ref[...].astype(jnp.float32)
    g = g_ref[...].astype(jnp.float32)
    contrib = _elem_loss(p, a, g)

    if needs_mask:
        # Mask rows past the end of the (m_rows, 128) slab: the ragged last
        # tile and any clamped overrun tiles of the last split. jnp.where
        # discards whatever garbage the partial DMA left in those rows.
        tile_idx = c * tiles_per_split + i
        row_ids = tile_idx * tile_rows + jax.lax.broadcasted_iota(
            jnp.int32, (tile_rows, LANE), 0)
        contrib = jnp.where(row_ids < m_rows, contrib, 0.0)

    # Lane-dense (8, 128) accumulator: straight vreg-wide VPU adds per step,
    # fully hidden under the (dominant) HBM DMA time.
    acc_ref[...] += contrib.reshape(tile_rows // SUBLANE, SUBLANE, LANE).sum(axis=0)

    @pl.when(i == pl.num_programs(1) - 1)
    def _():
        o_ref[...] = acc_ref[...]


def gt_aware_weighted_mse_loss4(pred, actual, gt_error, tolerance, *,
                                tile_rows=2048, num_splits=2):
    """Pallas implementation of GTAwareWeightedMSELoss4.forward (scalar f32)."""
    del tolerance  # unused by the reference forward
    assert pred.shape == actual.shape == gt_error.shape, "inputs must share a shape"

    n = pred.size
    if n == 0:
        return jnp.float32(jnp.nan)  # torch.mean of an empty tensor is nan

    p_flat = jnp.ravel(pred)
    a_flat = jnp.ravel(actual)
    g_flat = jnp.ravel(gt_error)

    # Bulk region handled by the kernel: largest multiple of 8*128 elements.
    row_elems = SUBLANE * LANE
    n_main = (n // row_elems) * row_elems
    m = n_main // LANE                      # rows of the (m, 128) slab (multiple of 8)

    kernel_sum = jnp.float32(0.0)
    if m > 0:
        tr = min(tile_rows, m)              # multiple of 8 (both operands are)
        total_tiles = (m + tr - 1) // tr
        splits = num_splits if total_tiles >= num_splits else 1
        tiles_per_split = (total_tiles + splits - 1) // splits
        needs_mask = (splits * tiles_per_split * tr) != m

        p2 = p_flat[:n_main].reshape(m, LANE)
        a2 = a_flat[:n_main].reshape(m, LANE)
        g2 = g_flat[:n_main].reshape(m, LANE)

        def in_map(c, i):
            t = c * tiles_per_split + i
            return (jnp.minimum(t, total_tiles - 1), 0)   # clamp overrun tiles

        kernel = functools.partial(
            _loss_kernel, tile_rows=tr, tiles_per_split=tiles_per_split,
            m_rows=m, needs_mask=needs_mask)

        partials = pl.pallas_call(
            kernel,
            out_shape=jax.ShapeDtypeStruct((splits * SUBLANE, LANE), jnp.float32),
            grid_spec=pltpu.PrefetchScalarGridSpec(
                num_scalar_prefetch=0,
                grid=(splits, tiles_per_split),
                in_specs=[
                    pl.BlockSpec((tr, LANE), in_map),
                    pl.BlockSpec((tr, LANE), in_map),
                    pl.BlockSpec((tr, LANE), in_map),
                ],
                out_specs=pl.BlockSpec((SUBLANE, LANE), lambda c, i: (c, 0)),
                scratch_shapes=[pltpu.VMEM((SUBLANE, LANE), jnp.float32)],
            ),
            compiler_params=pltpu.CompilerParams(
                dimension_semantics=("parallel", "arbitrary"),
            ),
        )(p2, a2, g2)
        kernel_sum = jnp.sum(partials)

    # Ragged tail (< 1024 elements): plain JAX; avoids a full-array jnp.pad copy.
    tail_sum = jnp.float32(0.0)
    if n_main < n:
        p_t = p_flat[n_main:].astype(jnp.float32)
        a_t = a_flat[n_main:].astype(jnp.float32)
        g_t = g_flat[n_main:].astype(jnp.float32)
        tail_sum = jnp.sum(_elem_loss(p_t, a_t, g_t))

    return (kernel_sum + tail_sum) / jnp.float32(n)


def _reference(pred, actual, gt_error, tolerance):
    # Pure-JAX mirror of the PyTorch forward.
    del tolerance
    p = pred.astype(jnp.float32)
    a = actual.astype(jnp.float32)
    g = gt_error.astype(jnp.float32)
    diff = a - p
    squared_loss = jnp.mean(diff ** 2)
    bool_positives = _sigmoid((0.5 - a) * 100.0)
    bool_false = _sigmoid((p - 0.5) * 100.0)
    fp_loss = jnp.mean(bool_false * bool_positives * g ** 2)
    return squared_loss + fp_loss


if __name__ == "__main__":
    key = jax.random.PRNGKey(0)
    k1, k2, k3, k4 = jax.random.split(key, 4)

    B, C, H, W = 2, 4, 16, 16  # NCHW, small synthetic shapes
    pred = jax.random.uniform(k1, (B, C, H, W), dtype=jnp.float32)
    actual = jax.random.uniform(k2, (B, C, H, W), dtype=jnp.float32)
    gt_error = jax.random.normal(k3, (B, C, H, W), dtype=jnp.float32)
    tolerance = jax.random.uniform(k4, (B, C, H, W), dtype=jnp.float32)

    out = gt_aware_weighted_mse_loss4(pred, actual, gt_error, tolerance)
    out = jax.block_until_ready(out)

    ref = _reference(pred, actual, gt_error, tolerance)
    assert jnp.allclose(out, ref, rtol=1e-5, atol=1e-5), (out, ref)

    print("KERNEL_OK")
</pallas_src>

<mosaic_0001>
module attributes {stable_mosaic.version = 11 : i64} {
  func.func @_loss_kernel(%arg0: i32, %arg1: i32, %arg2: memref<16x128xf32, #tpu.memory_space<vmem>>, %arg3: memref<16x128xf32, #tpu.memory_space<vmem>>, %arg4: memref<16x128xf32, #tpu.memory_space<vmem>>, %arg5: memref<8x128xf32, #tpu.memory_space<vmem>>, %arg6: memref<8x128xf32, #tpu.memory_space<vmem>>) attributes {dimension_semantics = [#tpu.dimension_semantics<parallel>, #tpu.dimension_semantics<arbitrary>], iteration_bounds = array<i64: 1, 1>, scalar_prefetch = 0 : i64, scratch_operands = 1 : i64, tpu.core_type = #tpu.core_type<tc>, window_params = [{transform_indices = @transform_0, window_bounds = array<i64: 16, 128>}, {transform_indices = @transform_1, window_bounds = array<i64: 16, 128>}, {transform_indices = @transform_2, window_bounds = array<i64: 16, 128>}, {transform_indices = @transform_3, window_bounds = array<i64: 8, 128>}]} {
    %c0_i32 = arith.constant 0 : i32
    %0 = arith.cmpi eq, %arg1, %c0_i32 : i32
    %1 = arith.extui %0 : i1 to i32
    %c0_i32_0 = arith.constant 0 : i32
    %2 = arith.cmpi ne, %1, %c0_i32_0 : i32
    scf.if %2 {
      %cst_22 = arith.constant 0.000000e+00 : f32
      %42 = vector.broadcast %cst_22 : f32 to vector<8x128xf32>
      %c0_23 = arith.constant 0 : index
      %c0_24 = arith.constant 0 : index
      %43 = vector.load %arg6[%c0_23, %c0_24] : memref<8x128xf32, #tpu.memory_space<vmem>>, vector<8x128xf32>
      tpu.vector_store %arg6[%c0_23, %c0_24], %42 {strides = array<i32>} : memref<8x128xf32, #tpu.memory_space<vmem>>, vector<8x128xf32>,
    } else {
    }
    %c0 = arith.constant 0 : index
    %c0_1 = arith.constant 0 : index
    %3 = vector.load %arg2[%c0, %c0_1] : memref<16x128xf32, #tpu.memory_space<vmem>>, vector<16x128xf32>
    %c0_2 = arith.constant 0 : index
    %c0_3 = arith.constant 0 : index
    %4 = vector.load %arg3[%c0_2, %c0_3] : memref<16x128xf32, #tpu.memory_space<vmem>>, vector<16x128xf32>
    %c0_4 = arith.constant 0 : index
    %c0_5 = arith.constant 0 : index
    %5 = vector.load %arg4[%c0_4, %c0_5] : memref<16x128xf32, #tpu.memory_space<vmem>>, vector<16x128xf32>
    %6 = arith.subf %4, %3 : vector<16x128xf32>
    %cst = arith.constant 5.000000e-01 : f32
    %7 = vector.broadcast %cst : f32 to vector<16x128xf32>
    %8 = arith.subf %3, %7 : vector<16x128xf32>
    %cst_6 = arith.constant 1.000000e+02 : f32
    %9 = vector.broadcast %cst_6 : f32 to vector<16x128xf32>
    %10 = arith.mulf %8, %9 : vector<16x128xf32>
    %cst_7 = arith.constant 0.000000e+00 : f32
    %11 = vector.broadcast %cst_7 : f32 to vector<16x128xf32>
    %12 = arith.subf %11, %10 : vector<16x128xf32>
    %13 = math.exp %12 : vector<16x128xf32>
    %cst_8 = arith.constant 1.000000e+00 : f32
    %14 = vector.broadcast %cst_8 : f32 to vector<16x128xf32>
    %15 = arith.addf %14, %13 : vector<16x128xf32>
    %cst_9 = arith.constant 1.000000e+00 : f32
    %16 = vector.broadcast %cst_9 : f32 to vector<16x128xf32>
    %17 = arith.divf %16, %15 : vector<16x128xf32>
    %cst_10 = arith.constant 5.000000e-01 : f32
    %18 = vector.broadcast %cst_10 : f32 to vector<16x128xf32>
    %19 = arith.subf %18, %4 : vector<16x128xf32>
    %cst_11 = arith.constant 1.000000e+02 : f32
    %20 = vector.broadcast %cst_11 : f32 to vector<16x128xf32>
    %21 = arith.mulf %19, %20 : vector<16x128xf32>
    %cst_12 = arith.constant 0.000000e+00 : f32
    %22 = vector.broadcast %cst_12 : f32 to vector<16x128xf32>
    %23 = arith.subf %22, %21 : vector<16x128xf32>
    %24 = math.exp %23 : vector<16x128xf32>
    %cst_13 = arith.constant 1.000000e+00 : f32
    %25 = vector.broadcast %cst_13 : f32 to vector<16x128xf32>
    %26 = arith.addf %25, %24 : vector<16x128xf32>
    %cst_14 = arith.constant 1.000000e+00 : f32
    %27 = vector.broadcast %cst_14 : f32 to vector<16x128xf32>
    %28 = arith.divf %27, %26 : vector<16x128xf32>
    %29 = arith.mulf %17, %28 : vector<16x128xf32>
    %30 = arith.mulf %6, %6 : vector<16x128xf32>
    %31 = arith.mulf %5, %5 : vector<16x128xf32>
    %32 = arith.mulf %29, %31 : vector<16x128xf32>
    %33 = arith.addf %30, %32 : vector<16x128xf32>
    %c0_15 = arith.constant 0 : index
    %c0_16 = arith.constant 0 : index
    %34 = vector.load %arg6[%c0_15, %c0_16] : memref<8x128xf32, #tpu.memory_space<vmem>>, vector<8x128xf32>
    %35 = vector.shape_cast %33 : vector<16x128xf32> to vector<2x8x128xf32>
    %cst_17 = arith.constant dense<0.000000e+00> : vector<8x128xf32>
    %36 = vector.multi_reduction <add>, %35, %cst_17 [0] : vector<2x8x128xf32> to vector<8x128xf32>
    %37 = arith.addf %34, %36 : vector<8x128xf32>
    %c0_18 = arith.constant 0 : index
    %c0_19 = arith.constant 0 : index
    %38 = vector.load %arg6[%c0_18, %c0_19] : memref<8x128xf32, #tpu.memory_space<vmem>>, vector<8x128xf32>
    tpu.vector_store %arg6[%c0_18, %c0_19], %37 {strides = array<i32>} : memref<8x128xf32, #tpu.memory_space<vmem>>, vector<8x128xf32>,
    %c0_i32_20 = arith.constant 0 : i32
    %39 = arith.cmpi eq, %arg1, %c0_i32_20 : i32
    %40 = arith.extui %39 : i1 to i32
    %c0_i32_21 = arith.constant 0 : i32
    %41 = arith.cmpi ne, %40, %c0_i32_21 : i32
    scf.if %41 {
      %c0_22 = arith.constant 0 : index
      %c0_23 = arith.constant 0 : index
      %42 = vector.load %arg6[%c0_22, %c0_23] : memref<8x128xf32, #tpu.memory_space<vmem>>, vector<8x128xf32>
      %c0_24 = arith.constant 0 : index
      %c0_25 = arith.constant 0 : index
      %43 = vector.load %arg5[%c0_24, %c0_25] : memref<8x128xf32, #tpu.memory_space<vmem>>, vector<8x128xf32>
      tpu.vector_store %arg5[%c0_24, %c0_25], %42 {strides = array<i32>} : memref<8x128xf32, #tpu.memory_space<vmem>>, vector<8x128xf32>,
    } else {
    }
    return
  }
  func.func @transform_0(%arg0: i32, %arg1: i32) -> (i32, i32) {
    %c1_i32 = arith.constant 1 : i32
    %0 = arith.muli %arg0, %c1_i32 : i32
    %1 = arith.addi %0, %arg1 : i32
    %c0_i32 = arith.constant 0 : i32
    %2 = arith.minsi %1, %c0_i32 : i32
    %c0_i32_0 = arith.constant 0 : i32
    %c0_i32_1 = arith.constant 0 : i32
    return %2, %c0_i32_0 : i32, i32
  }
  func.func @transform_1(%arg0: i32, %arg1: i32) -> (i32, i32) {
    %c1_i32 = arith.constant 1 : i32
    %0 = arith.muli %arg0, %c1_i32 : i32
    %1 = arith.addi %0, %arg1 : i32
    %c0_i32 = arith.constant 0 : i32
    %2 = arith.minsi %1, %c0_i32 : i32
    %c0_i32_0 = arith.constant 0 : i32
    %c0_i32_1 = arith.constant 0 : i32
    return %2, %c0_i32_0 : i32, i32
  }
  func.func @transform_2(%arg0: i32, %arg1: i32) -> (i32, i32) {
    %c1_i32 = arith.constant 1 : i32
    %0 = arith.muli %arg0, %c1_i32 : i32
    %1 = arith.addi %0, %arg1 : i32
    %c0_i32 = arith.constant 0 : i32
    %2 = arith.minsi %1, %c0_i32 : i32
    %c0_i32_0 = arith.constant 0 : i32
    %c0_i32_1 = arith.constant 0 : i32
    return %2, %c0_i32_0 : i32, i32
  }
  func.func @transform_3(%arg0: i32, %arg1: i32) -> (i32, i32) {
    %c0_i32 = arith.constant 0 : i32
    %c0_i32_0 = arith.constant 0 : i32
    return %arg0, %c0_i32 : i32, i32
  }
}

</mosaic_0001>

<llo_original>
// kernel: tpu_custom_call.1
$region0: #{tpu_custom_call.1}
  #allocation0 [shape = 'u32[]', space=smem, size = 0x4, offset = 0x4, fixed_abs, tag = 'smem constant byte address 0x4 - core index']
  #allocation1 [shape = 'u32[144,128]{1,0:T(1,128)}', space=vmem, size = 0x12000, scoped, tag = 'internal scratch']
  #allocation2 [shape = 'f32[8,128]{1,0:T(8,128)}', space=vmem, size = 0x1000, scoped, tag = 'scratch operand']
  %s0 = inlined_call_operand.hbm [shape: f32[16,128], index: 0, kind: input, shape index: {}]
  %s1 = inlined_call_operand.hbm [shape: f32[16,128], index: 1, kind: input, shape index: {}]
  %s2 = inlined_call_operand.hbm [shape: f32[16,128], index: 2, kind: input, shape index: {}]
  %s3 = inlined_call_operand.hbm [shape: f32[8,128], index: 3, kind: output, shape index: {}]
  %s4 = sld [smem:[#allocation0]]
  $region42: #{tpu_custom_call.1} parent=0
    _
  %s6 = ssub.s32 1, %s4
  %s7 = scalar_select 0, %s6, %s4
  $region1: #{tpu_custom_call.1} parent=0
    #allocation3 [shape = 'u8[8192]{0}', space=vmem, size = 0x2000, scoped, tag = 'input window, operand 0, single buffered']
    #allocation4 [shape = 's32[1]{0}', space=sflag, size = 0x4, scoped, tag = 'scoped memory for tpu_custom_call.1']
    #allocation5 [shape = 's32[1]{0}', space=sflag, size = 0x4, scoped, tag = 'scoped memory for tpu_custom_call.1']
    #allocation6 [shape = 'u8[8192]{0}', space=vmem, size = 0x2000, scoped, tag = 'input window, operand 1, single buffered']
    #allocation7 [shape = 's32[1]{0}', space=sflag, size = 0x4, scoped, tag = 'scoped memory for tpu_custom_call.1']
    #allocation8 [shape = 'u8[8192]{0}', space=vmem, size = 0x2000, scoped, tag = 'input window, operand 2, single buffered']
    #allocation9 [shape = 'u8[4096]{0}', space=vmem, size = 0x1000, scoped, tag = 'output window, operand 0, single buffered']
    %8 = vsyncpa [#allocation4], 0
    %9 = vsyncpa [#allocation7], 0
    %10 = vsyncpa [#allocation5], 0
    // Predicated region
    $region2: #{tpu_custom_call.1} parent=1 // pred_check
      _
    $region3: #{tpu_custom_call.1} parent=1 // pred_check_branch
      %12 = sbr.rel (0) target = $region5
    $region4: #{tpu_custom_call.1} parent=1 // pred_region
      %s13 = sadd.s32 0, 0
      %p14 = scmp.lt.s32.totalorder %s13, 0
      %s15 = scalar_select %p14, %s13, 0
      %s16 = smul.u32 2, %s15
      %s18 = ssub.s32 256, 256
      %19 = vsyncadd [#allocation4], %s18
      %s20 = smul.addr %s16, 128
      %s21 = scalar_lea.hbm %s0, %s20
      %s22 = sshll.u32 [#allocation3], 4
      %s23 = int_to_ptr.vmem [resolvable:$true] %s22
      %28 = dma.hbm_to_vmem [thread:$0]  %s21, 256, %s23, [#allocation4], 128, 128, 8
    $region5: #{tpu_custom_call.1} parent=1 // pred_fallthru
      _
    // Predicated region
    $region6: #{tpu_custom_call.1} parent=1 // pred_check
      _
    $region7: #{tpu_custom_call.1} parent=1 // pred_check_branch
      %30 = sbr.rel (0) target = $region9
    $region8: #{tpu_custom_call.1} parent=1 // pred_region
      %s31 = sadd.s32 0, 0
      %p32 = scmp.lt.s32.totalorder %s31, 0
      %s33 = scalar_select %p32, %s31, 0
      %s34 = smul.u32 2, %s33
      %s36 = ssub.s32 256, 256
      %37 = vsyncadd [#allocation7], %s36
      %s38 = smul.addr %s34, 128
      %s39 = scalar_lea.hbm %s1, %s38
      %s40 = sshll.u32 [#allocation6], 4
      %s41 = int_to_ptr.vmem [resolvable:$true] %s40
      %46 = dma.hbm_to_vmem [thread:$0]  %s39, 256, %s41, [#allocation7], 128, 128, 8
    $region9: #{tpu_custom_call.1} parent=1 // pred_fallthru
      _
    // Predicated region
    $region10: #{tpu_custom_call.1} parent=1 // pred_check
      _
    $region11: #{tpu_custom_call.1} parent=1 // pred_check_branch
      %48 = sbr.rel (0) target = $region13
    $region12: #{tpu_custom_call.1} parent=1 // pred_region
      %s49 = sadd.s32 0, 0
      %p50 = scmp.lt.s32.totalorder %s49, 0
      %s51 = scalar_select %p50, %s49, 0
      %s52 = smul.u32 2, %s51
      %s54 = ssub.s32 256, 256
      %55 = vsyncadd [#allocation7], %s54
      %s56 = smul.addr %s52, 128
      %s57 = scalar_lea.hbm %s2, %s56
      %s58 = sshll.u32 [#allocation8], 4
      %s59 = int_to_ptr.vmem [resolvable:$true] %s58
      %64 = dma.hbm_to_vmem [thread:$0]  %s57, 256, %s59, [#allocation7], 128, 128, 8
    $region13: #{tpu_custom_call.1} parent=1 // pred_fallthru
      _
    // Predicated region
    $region14: #{tpu_custom_call.1} parent=1 // pred_check
      _
    $region15: #{tpu_custom_call.1} parent=1 // pred_check_branch
      %66 = sbr.rel (0) target = $region17
    $region16: #{tpu_custom_call.1} parent=1 // pred_region
      %67 = dma.done [#allocation4], 256
    $region17: #{tpu_custom_call.1} parent=1 // pred_fallthru
      _
    // Predicated region
    $region18: #{tpu_custom_call.1} parent=1 // pred_check
      _
    $region19: #{tpu_custom_call.1} parent=1 // pred_check_branch
      %69 = sbr.rel (0) target = $region21
    $region20: #{tpu_custom_call.1} parent=1 // pred_region
      %70 = dma.done [#allocation7], 256
    $region21: #{tpu_custom_call.1} parent=1 // pred_fallthru
      _
    // Predicated region
    $region22: #{tpu_custom_call.1} parent=1 // pred_check
      _
    $region23: #{tpu_custom_call.1} parent=1 // pred_check_branch
      %72 = sbr.rel (0) target = $region25
    $region24: #{tpu_custom_call.1} parent=1 // pred_region
      %73 = dma.done [#allocation7], 256
    $region25: #{tpu_custom_call.1} parent=1 // pred_fallthru
      _
    %s74 = sadd.s32 0, 0
    %p75 = scmp.lt.s32.totalorder %s74, 0
    %s76 = scalar_select %p75, %s74, 0
    %s77 = smul.u32 2, %s76
    %s78 = sadd.s32 0, 0
    %p79 = scmp.lt.s32.totalorder %s78, 0
    %s80 = scalar_select %p79, %s78, 0
    %s81 = smul.u32 2, %s80
    %s82 = sadd.s32 0, 0
    %p83 = scmp.lt.s32.totalorder %s82, 0
    %s84 = scalar_select %p83, %s82, 0
    %s85 = smul.u32 2, %s84
    %p86 = scmp.eq.s32.totalorder 0, 0
    // Predicated region
    $region26: #{tpu_custom_call.1} parent=1 // pred_check
      %p87 = pneg %p86
    $region27: #{tpu_custom_call.1} parent=1 // pred_check_branch
      %89 = sbr.rel (%p87) target = $region29
    $region28: #{tpu_custom_call.1} parent=1 // pred_region
      %90 = vst [vmem:[#allocation2] sm:$0xff] 0.0
    $region29: #{tpu_custom_call.1} parent=1 // pred_fallthru
      _
    %v91 = vld [vmem:[#allocation3] sm:$0xff]
    %v92 = vld [vmem:[#allocation3 + $0x8] sm:$0xff]
    %v93 = vld [vmem:[#allocation6] sm:$0xff]
    %v94 = vld [vmem:[#allocation6 + $0x8] sm:$0xff]
    %v95 = vld [vmem:[#allocation8] sm:$0xff]
    %v96 = vld [vmem:[#allocation8 + $0x8] sm:$0xff]
    %v97 = vsub.f32 %v93, %v91
    %v98 = vsub.f32 %v94, %v92
    %v99 = vsub.f32 %v91, 0.5
    %v100 = vsub.f32 %v92, 0.5
    %v101 = vmul.f32 %v99, 100.0
    %v102 = vmul.f32 %v100, 100.0
    %v103 = vsub.f32 0.0, %v101
    %v104 = vsub.f32 0.0, %v102
    %v105 = vmul.f32 %v103, 1.442695
    %v106 = vpow.pop %v105
    %v107 = vmul.f32 %v104, 1.442695
    %v108 = vpow.pop %v107
    %v109 = vadd.f32 %v106, 1.0
    %v110 = vadd.f32 %v108, 1.0
    %v111 = vrcp.pop %v109
    %v112 = vmul.f32 1.0, %v111
    %v113 = vrcp.pop %v110
    %v114 = vmul.f32 1.0, %v113
    %v115 = vsub.f32 0.5, %v93
    %v116 = vsub.f32 0.5, %v94
    %v117 = vmul.f32 %v115, 100.0
    %v118 = vmul.f32 %v116, 100.0
    %v119 = vsub.f32 0.0, %v117
    %v120 = vsub.f32 0.0, %v118
    %v121 = vmul.f32 %v119, 1.442695
    %v122 = vpow.pop %v121
    %v123 = vmul.f32 %v120, 1.442695
    %v124 = vpow.pop %v123
    %v125 = vadd.f32 %v122, 1.0
    %v126 = vadd.f32 %v124, 1.0
    %v127 = vrcp.pop %v125
    %v128 = vmul.f32 1.0, %v127
    %v129 = vrcp.pop %v126
    %v130 = vmul.f32 1.0, %v129
    %v131 = vmul.f32 %v112, %v128
    %v132 = vmul.f32 %v114, %v130
    %v133 = vmul.f32 %v97, %v97
    %v134 = vmul.f32 %v98, %v98
    %v135 = vmul.f32 %v95, %v95
    %v136 = vmul.f32 %v96, %v96
    %v137 = vmul.f32 %v131, %v135
    %v138 = vmul.f32 %v132, %v136
    %v139 = vadd.f32 %v133, %v137
    %v140 = vadd.f32 %v134, %v138
    %v141 = vld [vmem:[#allocation2] sm:$0xff]
    %v142 = vadd.f32 %v139, %v140
    %v143 = vadd.f32 %v141, %v142
    %144 = vst [vmem:[#allocation2] sm:$0xff] %v143
    // Predicated region
    $region30: #{tpu_custom_call.1} parent=1 // pred_check
      %p145 = pneg %p86
    $region31: #{tpu_custom_call.1} parent=1 // pred_check_branch
      %147 = sbr.rel (%p145) target = $region33
    $region32: #{tpu_custom_call.1} parent=1 // pred_region
      %v148 = vld [vmem:[#allocation2] sm:$0xff]
      %149 = vst [vmem:[#allocation9] sm:$0xff] %v148
    $region33: #{tpu_custom_call.1} parent=1 // pred_fallthru
      _
    // Predicated region
    $region34: #{tpu_custom_call.1} parent=1 // pred_check
      _
    $region35: #{tpu_custom_call.1} parent=1 // pred_check_branch
      %151 = sbr.rel (0) target = $region37
    $region36: #{tpu_custom_call.1} parent=1 // pred_region
      %s153 = ssub.s32 128, 128
      %154 = vsyncadd [#allocation5], %s153
      %s156 = sshll.u32 [#allocation9], 4
      %s157 = int_to_ptr.vmem [resolvable:$true] %s156
      %159 = dma.vmem_to_hbm [thread:$0]  %s157, 128, %s3, [#allocation5]
    $region37: #{tpu_custom_call.1} parent=1 // pred_fallthru
      _
    // Predicated region
    $region38: #{tpu_custom_call.1} parent=1 // pred_check
      _
    $region39: #{tpu_custom_call.1} parent=1 // pred_check_branch
      %161 = sbr.rel (0) target = $region41
    $region40: #{tpu_custom_call.1} parent=1 // pred_region
      %162 = dma.done [#allocation5], 128
    $region41: #{tpu_custom_call.1} parent=1 // pred_fallthru
      _
    %163 = vsyncpa [#allocation4], 1
    %164 = vsyncpa [#allocation7], 1
    %165 = vsyncpa [#allocation5], 1

</llo_original>
